<compile_context>
chip_gen: v6e
topology: v6e:2x2x1
jax: 0.10.0
libtpu: 0.0.40
codegen_flags: <defaults>
</compile_context>

<pallas_src>
import functools

import jax
import jax.numpy as jnp
from jax import lax
from jax.experimental import pallas as pl
from jax.experimental.pallas import tpu as pltpu


# --------------------------------------------------------------------------
# Fused kernel: conv (single MXU matmul) -> batch stats -> folded BN -> ReLU6
#   a_ref     : (9*C_in, L)  stacked-tap activations, zero-padded lanes
#   w_ref     : (C_out, 9*C_in)
#   gamma_ref : (C_out, 1)
#   beta_ref  : (C_out, 1)
#   out_ref   : (C_out, L)   lane-dense (L multiple of 128)
# --------------------------------------------------------------------------
def _head_kernel(a_ref, w_ref, gamma_ref, beta_ref, out_ref, *, inv_count, eps):
    # One MXU push: (C_out, 9*C_in) x (9*C_in, L), f32 accumulation.
    conv = jnp.dot(w_ref[...], a_ref[...], preferred_element_type=jnp.float32)

    # Train-mode batch statistics over the lane axis (zero-padded lanes
    # contribute 0 to both sums; inv_count uses the true element count).
    mean = jnp.sum(conv, axis=1, keepdims=True) * inv_count          # (C_out, 1)
    ex2 = jnp.sum(conv * conv, axis=1, keepdims=True) * inv_count    # (C_out, 1)
    var = ex2 - mean * mean                                          # biased var

    scale = gamma_ref[...] * lax.rsqrt(var + eps)                    # (C_out, 1)
    shift = beta_ref[...] - mean * scale

    out_ref[...] = jnp.clip(conv * scale + shift, 0.0, 6.0)          # BN + ReLU6


# --------------------------------------------------------------------------
# Public forward: NCHW in -> NCHW out, matching the PyTorch module.
# --------------------------------------------------------------------------
def head_forward(x, w, gamma, beta, *, eps=1e-5, mxu_dtype=jnp.float32):
    N, C_in, H, W = x.shape
    C_out = w.shape[0]
    H_out = (H + 2 - 3) // 2 + 1
    W_out = (W + 2 - 3) // 2 + 1
    m = H_out * W_out
    n_valid = N * m
    L = ((n_valid + 127) // 128) * 128            # lane-dense: multiple of 128

    # Single-block, fits-in-VMEM design.
    assert (9 * C_in + 2 * C_out) * L * 4 < 8 * 1024 * 1024, \
        "shape too large for the single-block kernel; needs a tiled variant"

    # padding=1 on each side (Conv2d(3, stride=2, padding=1), bias=False).
    x_pad = jnp.pad(x.astype(jnp.float32), ((0, 0), (0, 0), (1, 1), (1, 1)))

    # Stacked-tap activation:
    #   A[(kh*3+kw)*C_in + ci, n*m + r*W_out + c] = x_pad[n, ci, 2r+kh, 2c+kw]
    taps = []
    for kh in range(3):
        for kw in range(3):
            taps.append(lax.slice(
                x_pad,
                (0, 0, kh, kw),
                (N, C_in, kh + 2 * H_out - 1, kw + 2 * W_out - 1),
                (1, 1, 2, 2)))                    # (N, C_in, H_out, W_out)
    a = jnp.stack(taps, axis=0)                   # (9, N, C_in, H_out, W_out)
    a = a.transpose(0, 2, 1, 3, 4).reshape(9 * C_in, n_valid)
    if L != n_valid:
        a = jnp.pad(a, ((0, 0), (0, L - n_valid)))  # zero lanes: stats unaffected

    # Weights as one (C_out, 9*C_in) matrix matching A's row ordering.
    w2 = w.astype(jnp.float32).transpose(0, 2, 3, 1).reshape(C_out, 9 * C_in)

    gamma2 = gamma.astype(jnp.float32).reshape(C_out, 1)
    beta2 = beta.astype(jnp.float32).reshape(C_out, 1)

    vmem_spec = pl.BlockSpec(memory_space=pltpu.MemorySpace.VMEM)
    out_flat = pl.pallas_call(
        functools.partial(_head_kernel,
                          inv_count=1.0 / float(n_valid), eps=float(eps)),
        in_specs=[vmem_spec] * 4,
        out_specs=vmem_spec,
        out_shape=jax.ShapeDtypeStruct((C_out, L), jnp.float32),
    )(a.astype(mxu_dtype), w2.astype(mxu_dtype), gamma2, beta2)

    # (C_out, N*m) -> (N, C_out, H', W'): one tiny XLA reshape + transpose.
    out = out_flat[:, :n_valid].reshape(C_out, N, H_out, W_out)
    return out.transpose(1, 0, 2, 3)


# --------------------------------------------------------------------------
# Pure-JAX reference (train-mode BN, matches the PyTorch forward).
# --------------------------------------------------------------------------
def head_reference(x, w, gamma, beta, eps=1e-5):
    conv = lax.conv_general_dilated(
        x, w, window_strides=(2, 2), padding=((1, 1), (1, 1)),
        dimension_numbers=("NCHW", "OIHW", "NCHW"))
    mean = conv.mean(axis=(0, 2, 3), keepdims=True)
    var = ((conv - mean) ** 2).mean(axis=(0, 2, 3), keepdims=True)
    y = (conv - mean) * lax.rsqrt(var + eps) * gamma.reshape(1, -1, 1, 1) \
        + beta.reshape(1, -1, 1, 1)
    return jnp.clip(y, 0.0, 6.0)


if __name__ == "__main__":
    # Head(inp_c=4, out_c=8) on a (2, 4, 16, 16) input.
    N, C_in, H, W = 2, 4, 16, 16
    C_out = 8

    key = jax.random.PRNGKey(0)
    kx, kw, kg, kb = jax.random.split(key, 4)
    x = jax.random.normal(kx, (N, C_in, H, W), dtype=jnp.float32)
    w = 0.1 * jax.random.normal(kw, (C_out, C_in, 3, 3), dtype=jnp.float32)
    gamma = 1.0 + 0.1 * jax.random.normal(kg, (C_out,), dtype=jnp.float32)
    beta = 0.1 * jax.random.normal(kb, (C_out,), dtype=jnp.float32)

    out = jax.block_until_ready(jax.jit(head_forward)(x, w, gamma, beta))
    ref = jax.block_until_ready(head_reference(x, w, gamma, beta))

    assert out.shape == (N, C_out, H // 2, W // 2), out.shape
    assert jnp.allclose(out, ref, atol=1e-4, rtol=1e-4), \
        float(jnp.max(jnp.abs(out - ref)))

    print("KERNEL_OK")
</pallas_src>

<mosaic_0001>
module attributes {stable_mosaic.version = 11 : i64} {
  func.func @_head_kernel(%arg0: memref<36x128xf32, #tpu.memory_space<vmem>>, %arg1: memref<8x36xf32, #tpu.memory_space<vmem>>, %arg2: memref<8x1xf32, #tpu.memory_space<vmem>>, %arg3: memref<8x1xf32, #tpu.memory_space<vmem>>, %arg4: memref<8x128xf32, #tpu.memory_space<vmem>>) attributes {dimension_semantics = [], scalar_prefetch = 0 : i64, scratch_operands = 0 : i64, tpu.core_type = #tpu.core_type<tc>} {
    %c0 = arith.constant 0 : index
    %c0_0 = arith.constant 0 : index
    %0 = vector.load %arg1[%c0, %c0_0] : memref<8x36xf32, #tpu.memory_space<vmem>>, vector<8x36xf32>
    %c0_1 = arith.constant 0 : index
    %c0_2 = arith.constant 0 : index
    %1 = vector.load %arg0[%c0_1, %c0_2] : memref<36x128xf32, #tpu.memory_space<vmem>>, vector<36x128xf32>
    %cst = arith.constant dense<0.000000e+00> : vector<8x128xf32>
    %2 = tpu.matmul %0, %1, %cst {dimension_numbers = #tpu.dot_dimension_numbers<[1], [0], [0], [1], [0, 0, 1, 1], [], []>} : vector<8x36xf32>, vector<36x128xf32>, vector<8x128xf32> -> vector<8x128xf32>
    %cst_3 = arith.constant dense<0.000000e+00> : vector<8xf32>
    %3 = vector.multi_reduction <add>, %2, %cst_3 [1] : vector<8x128xf32> to vector<8xf32>
    %4 = vector.shape_cast %3 : vector<8xf32> to vector<8x1xf32>
    %cst_4 = arith.constant 7.812500e-03 : f32
    %5 = vector.broadcast %cst_4 : f32 to vector<8x1xf32>
    %6 = arith.mulf %4, %5 : vector<8x1xf32>
    %7 = arith.mulf %2, %2 : vector<8x128xf32>
    %cst_5 = arith.constant dense<0.000000e+00> : vector<8xf32>
    %8 = vector.multi_reduction <add>, %7, %cst_5 [1] : vector<8x128xf32> to vector<8xf32>
    %9 = vector.shape_cast %8 : vector<8xf32> to vector<8x1xf32>
    %cst_6 = arith.constant 7.812500e-03 : f32
    %10 = vector.broadcast %cst_6 : f32 to vector<8x1xf32>
    %11 = arith.mulf %9, %10 : vector<8x1xf32>
    %12 = arith.mulf %6, %6 : vector<8x1xf32>
    %13 = arith.subf %11, %12 : vector<8x1xf32>
    %c0_7 = arith.constant 0 : index
    %c0_8 = arith.constant 0 : index
    %14 = vector.load %arg2[%c0_7, %c0_8] : memref<8x1xf32, #tpu.memory_space<vmem>>, vector<8x1xf32>
    %cst_9 = arith.constant 9.99999974E-6 : f32
    %15 = vector.broadcast %cst_9 : f32 to vector<8x1xf32>
    %16 = arith.addf %13, %15 : vector<8x1xf32>
    %17 = math.rsqrt %16 : vector<8x1xf32>
    %18 = arith.mulf %14, %17 : vector<8x1xf32>
    %c0_10 = arith.constant 0 : index
    %c0_11 = arith.constant 0 : index
    %19 = vector.load %arg3[%c0_10, %c0_11] : memref<8x1xf32, #tpu.memory_space<vmem>>, vector<8x1xf32>
    %20 = arith.mulf %6, %18 : vector<8x1xf32>
    %21 = arith.subf %19, %20 : vector<8x1xf32>
    %22 = vector.broadcast %18 : vector<8x1xf32> to vector<8x128xf32>
    %23 = arith.mulf %2, %22 : vector<8x128xf32>
    %24 = vector.broadcast %21 : vector<8x1xf32> to vector<8x128xf32>
    %25 = arith.addf %23, %24 : vector<8x128xf32>
    %cst_12 = arith.constant 0.000000e+00 : f32
    %cst_13 = arith.constant 6.000000e+00 : f32
    %26 = vector.broadcast %cst_12 : f32 to vector<8x128xf32>
    %27 = arith.maximumf %26, %25 : vector<8x128xf32>
    %28 = vector.broadcast %cst_13 : f32 to vector<8x128xf32>
    %29 = arith.minimumf %28, %27 : vector<8x128xf32>
    %c0_14 = arith.constant 0 : index
    %c0_15 = arith.constant 0 : index
    %30 = vector.load %arg4[%c0_14, %c0_15] : memref<8x128xf32, #tpu.memory_space<vmem>>, vector<8x128xf32>
    tpu.vector_store %arg4[%c0_14, %c0_15], %29 {strides = array<i32>} : memref<8x128xf32, #tpu.memory_space<vmem>>, vector<8x128xf32>,
    return
  }
}

</mosaic_0001>

<llo_original>
// kernel: head_forward.1
$region0: #{head_forward.1}
  #allocation0 [shape = 'u32[]', space=smem, size = 0x4, offset = 0x4, fixed_abs, tag = 'smem constant byte address 0x4 - core index']
  #allocation1 [shape = 'u32[144,128]{1,0:T(1,128)}', space=vmem, size = 0x12000, scoped, tag = 'internal scratch']
  %s0 = inlined_call_operand.vmem [shape: f32[36,128], index: 0, kind: input, shape index: {}]
  %s1 = inlined_call_operand.vmem [shape: f32[8,36], index: 1, kind: input, shape index: {}]
  %s2 = inlined_call_operand.vmem [shape: f32[8,1], index: 2, kind: input, shape index: {}]
  %s3 = inlined_call_operand.vmem [shape: f32[8,1], index: 3, kind: input, shape index: {}]
  %s4 = inlined_call_operand.vmem [shape: f32[8,128], index: 4, kind: output, shape index: {}]
  %s5 = sld [smem:[#allocation0]]
  $region26: #{head_forward.1} parent=0
    _
  %s7 = ssub.s32 1, %s5
  %s8 = scalar_select 0, %s7, %s5
  // Predicated region
  $region2: #{head_forward.1} parent=0 // pred_check
    _
  $region3: #{head_forward.1} parent=0 // pred_check_branch
    %10 = sbr.rel (0) target = $region5
  $region4: #{head_forward.1} parent=0 // pred_region
    _
  $region5: #{head_forward.1} parent=0 // pred_fallthru
    _
  // Predicated region
  $region6: #{head_forward.1} parent=0 // pred_check
    _
  $region7: #{head_forward.1} parent=0 // pred_check_branch
    %12 = sbr.rel (0) target = $region9
  $region8: #{head_forward.1} parent=0 // pred_region
    _
  $region9: #{head_forward.1} parent=0 // pred_fallthru
    _
  // Predicated region
  $region10: #{head_forward.1} parent=0 // pred_check
    _
  $region11: #{head_forward.1} parent=0 // pred_check_branch
    %14 = sbr.rel (0) target = $region13
  $region12: #{head_forward.1} parent=0 // pred_region
    _
  $region13: #{head_forward.1} parent=0 // pred_fallthru
    _
  // Predicated region
  $region14: #{head_forward.1} parent=0 // pred_check
    _
  $region15: #{head_forward.1} parent=0 // pred_check_branch
    %16 = sbr.rel (0) target = $region17
  $region16: #{head_forward.1} parent=0 // pred_region
    _
  $region17: #{head_forward.1} parent=0 // pred_fallthru
    _
  %v17 = vld [vmem:[%s1] sm:$0xff]
  %v18 = vld [vmem:[%s0] sm:$0xff]
  %v19 = vld [vmem:[%s0 + $0x8] sm:$0xff]
  %v20 = vld [vmem:[%s0 + $0x10] sm:$0xff]
  %v21 = vld [vmem:[%s0 + $0x18] sm:$0xff]
  %v22 = vld [vmem:[%s0 + $0x20] sm:$0xf]
  %vm23 = vcmask 293888
  %v25 = vsel %vm23, %v17, 0
  %vm27 = vcmask 1043456
  %v29 = vsel %vm27, %v22, 0
  %31 = vmatprep.subr.mxu0 0.0
  %32 = vmatpush1.msra.mxu0 0.0
  %33 = vmatprep.subr.mxu0 0.0
  %34 = vmatpush1.msra.mxu0 0.0
  %35 = vmatprep.subr.mxu0 0.0
  %36 = vmatpush1.msra.mxu0 0.0
  %37 = vmatprep.subr.mxu0 0.0
  %38 = vmatpush1.msra.mxu0 0.0
  %39 = vmatprep.subr.mxu0 0.0
  %40 = vmatpush1.msra.mxu0 0.0
  %41 = vmatprep.subr.mxu0 0.0
  %42 = vmatpush1.msra.mxu0 0.0
  %43 = vmatprep.subr.mxu0 0.0
  %44 = vmatpush1.msra.mxu0 0.0
  %45 = vmatprep.subr.mxu0 0.0
  %46 = vmatpush1.msra.mxu0 0.0
  %47 = vmatprep.subr.mxu0 0.0
  %48 = vmatpush1.msra.mxu0 0.0
  %49 = vmatprep.subr.mxu0 0.0
  %50 = vmatpush1.msra.mxu0 0.0
  %51 = vmatprep.subr.mxu0 0.0
  %52 = vmatpush1.msra.mxu0 0.0
  %53 = vmatprep.subr.mxu0 0.0
  %54 = vmatpush1.msra.mxu0 %v29
  %55 = vmatprep.subr.mxu0 0.0
  %56 = vmatpush1.msra.mxu0 %v21
  %57 = vmatprep.subr.mxu0 0.0
  %58 = vmatpush1.msra.mxu0 %v20
  %59 = vmatprep.subr.mxu0 0.0
  %60 = vmatpush1.msra.mxu0 %v19
  %61 = vmatprep.subr.mxu0 0.0
  %62 = vmatpush1.msra.mxu0 %v18
  %63 = vmatprep.subr.mxu0 0.0
  %64 = vmatpush2.msra.mxu0 0.0
  %65 = vmatprep.subr.mxu0 0.0
  %66 = vmatpush2.msra.mxu0 0.0
  %67 = vmatprep.subr.mxu0 0.0
  %68 = vmatpush2.msra.mxu0 0.0
  %69 = vmatprep.subr.mxu0 0.0
  %70 = vmatpush2.msra.mxu0 0.0
  %71 = vmatprep.subr.mxu0 0.0
  %72 = vmatpush2.msra.mxu0 0.0
  %73 = vmatprep.subr.mxu0 0.0
  %74 = vmatpush2.msra.mxu0 0.0
  %75 = vmatprep.subr.mxu0 0.0
  %76 = vmatpush2.msra.mxu0 0.0
  %77 = vmatprep.subr.mxu0 0.0
  %78 = vmatpush2.msra.mxu0 0.0
  %79 = vmatprep.subr.mxu0 0.0
  %80 = vmatpush2.msra.mxu0 0.0
  %81 = vmatprep.subr.mxu0 0.0
  %82 = vmatpush2.msra.mxu0 0.0
  %83 = vmatprep.subr.mxu0 0.0
  %84 = vmatpush2.msra.mxu0 0.0
  %85 = vmatprep.subr.mxu0 0.0
  %86 = vmatpush2.msra.mxu0 0.0
  %87 = vmatprep.subr.mxu0 0.0
  %88 = vmatpush2.msra.mxu0 0.0
  %89 = vmatprep.subr.mxu0 0.0
  %90 = vmatpush2.msra.mxu0 0.0
  %91 = vmatprep.subr.mxu0 0.0
  %92 = vmatpush2.msra.mxu0 0.0
  %93 = vmatprep.subr.mxu0 0.0
  %94 = vmatpush2.msra.mxu0 0.0
  %95 = vmatprep.mubr.f32.mxu0 0.0
  %96 = vmatmul.mubr.f32.gmra.mxu0 %v25
  %v97 = vpop.f32.mrf.mxu0
  %v98 = vadd.f32 0.0, %v97
  %v99 = vpop.f32.mrf.mxu0
  %100 = vdwg.mxu0
  %101 = vadd.xlane.f32.xlu0 %v98
  %v102 = vpop.xlane.xlu0 %101
  %v103 = vmul.f32 %v102, 0.0078125
  %v104 = vmul.f32 %v98, %v98
  %105 = vadd.xlane.f32.xlu0 %v104
  %v106 = vpop.xlane.xlu0 %105
  %v107 = vmul.f32 %v106, 0.0078125
  %v108 = vmul.f32 %v103, %v103
  %v109 = vsub.f32 %v107, %v108
  %v110 = vld [vmem:[%s2] sm:$0xff]
  %v111 = vadd.f32 %v109, 1e-05
  %v112 = vrsqrt.pop %v111
  %v113 = vmul.f32 %v110, %v112
  %v114 = vld [vmem:[%s3] sm:$0xff]
  %v115 = vmul.f32 %v103, %v113
  %v116 = vsub.f32 %v114, %v115
  %118 = vset.pattern.permute.xlu0 0
  %119 = vperm.xlu0 %118, %v113
  %v120 = vpop.permute.xlu0 %119
  %v122 = vmul.f32 %v98, %v120
  %124 = vset.pattern.permute.xlu0 0
  %125 = vperm.xlu0 %124, %v116
  %v126 = vpop.permute.xlu0 %125
  %v128 = vadd.f32 %v122, %v126
  %v129 = vmax.f32 %v128, 0.0
  %v130 = vmin.f32 %v129, 6.0
  %131 = vst [vmem:[%s4] sm:$0xff] %v130
  // Predicated region
  $region18: #{head_forward.1} parent=0 // pred_check
    _
  $region19: #{head_forward.1} parent=0 // pred_check_branch
    %133 = sbr.rel (0) target = $region21
  $region20: #{head_forward.1} parent=0 // pred_region
    _
  $region21: #{head_forward.1} parent=0 // pred_fallthru
    _
  // Predicated region
  $region22: #{head_forward.1} parent=0 // pred_check
    _
  $region23: #{head_forward.1} parent=0 // pred_check_branch
    %135 = sbr.rel (0) target = $region25
  $region24: #{head_forward.1} parent=0 // pred_region
    _
  $region25: #{head_forward.1} parent=0 // pred_fallthru
    _

</llo_original>
